<compile_context>
chip_gen: v5e
topology: v5e:2x2
jax: 0.10.0
libtpu: 0.0.40
codegen_flags: <defaults>
</compile_context>

<pallas_src>
import jax
import jax.numpy as jnp
from jax.experimental import pallas as pl
from jax.experimental.pallas import tpu as pltpu


def _round_up(a, b):
    return (a + b - 1) // b * b


# --------------------------------------------------------------------------
# identity path: out = relu(x + x)
# --------------------------------------------------------------------------
def _relu_double_kernel(x_ref, o_ref):
    x = x_ref[...]
    o_ref[...] = jnp.maximum(x + x, 0).astype(o_ref.dtype)


def _identity_path(x, *, lanes=512, tm_target=1024):
    orig_shape = x.shape
    total = x.size
    xf = x.reshape(-1)

    rows = pl.cdiv(total, lanes)
    tm = min(tm_target, _round_up(rows, 8))        # sublane-aligned row tile
    rows_pad = _round_up(rows, tm)
    total_pad = rows_pad * lanes
    if total_pad != total:
        xf = jnp.pad(xf, (0, total_pad - total))
    x2d = xf.reshape(rows_pad, lanes)

    out2d = pl.pallas_call(
        _relu_double_kernel,
        out_shape=jax.ShapeDtypeStruct((rows_pad, lanes), x.dtype),
        grid=(rows_pad // tm,),
        in_specs=[pl.BlockSpec((tm, lanes), lambda i: (i, 0))],
        out_specs=pl.BlockSpec((tm, lanes), lambda i: (i, 0)),
        compiler_params=pltpu.CompilerParams(
            dimension_semantics=("parallel",)),
    )(x2d)

    return out2d.reshape(-1)[:total].reshape(orig_shape)


# --------------------------------------------------------------------------
# conv path (in_dim == 1 != dim): out[:, o] = relu((w[o] + 1) * x + b[o])
# --------------------------------------------------------------------------
def _affine_residual_relu_kernel(x_ref, s_ref, b_ref, o_ref):
    # x_ref: (1, 1, TS)   s_ref / b_ref: (1, dim, 1)   o_ref: (1, dim, TS)
    x = x_ref[...].astype(jnp.float32)
    y = s_ref[...] * x + b_ref[...]          # VPU broadcast multiply-add (no MXU)
    o_ref[...] = jnp.maximum(y, 0.0).astype(o_ref.dtype)


def _conv1x1_path(x_nchw, weight, bias, dim, *, ts_target=2048):
    n, _, h, w = x_nchw.shape
    hw = h * w

    # Fold the residual (x broadcast over output channels) into the scale:
    # conv(x) + x = (w + 1) * x + b   (per output channel, in_dim == 1)
    scale = (weight[:, 0, 0, 0].astype(jnp.float32) + 1.0).reshape(1, dim, 1)
    bias3 = bias.astype(jnp.float32).reshape(1, dim, 1)

    # Channel-leading, lane-dense layout: (n, 1, H*W) -> (n, dim, H*W).
    ts = min(ts_target, _round_up(hw, 128))  # lane tile, multiple of 128
    hw_pad = _round_up(hw, ts)
    x3 = x_nchw.reshape(n, 1, hw)
    if hw_pad != hw:
        x3 = jnp.pad(x3, ((0, 0), (0, 0), (0, hw_pad - hw)))

    out3 = pl.pallas_call(
        _affine_residual_relu_kernel,
        out_shape=jax.ShapeDtypeStruct((n, dim, hw_pad), x_nchw.dtype),
        grid=(n, hw_pad // ts),
        in_specs=[
            pl.BlockSpec((1, 1, ts), lambda b, s: (b, 0, s)),
            pl.BlockSpec((1, dim, 1), lambda b, s: (0, 0, 0)),   # fetched once
            pl.BlockSpec((1, dim, 1), lambda b, s: (0, 0, 0)),   # fetched once
        ],
        out_specs=pl.BlockSpec((1, dim, ts), lambda b, s: (b, 0, s)),
        compiler_params=pltpu.CompilerParams(
            dimension_semantics=("parallel", "parallel")),
    )(x3, scale, bias3)

    # Channel-leading output -> NCHW is a free reshape (no transpose pass).
    return out3[:, :, :hw].reshape(n, dim, h, w)


def residual_block_forward(x_nchw, params, in_dim, dim):
    """Pallas implementation of ResidualBlock.forward. x_nchw: (N, C, H, W)."""
    n, c, h, w = x_nchw.shape
    assert c == in_dim, "channel dim of input must equal in_dim"

    if in_dim == dim:
        # res_branch = Identity -> relu(x + x)
        return _identity_path(x_nchw)

    if in_dim != 1:
        # PyTorch itself raises a broadcast error on (N,dim,H,W)+(N,in_dim,H,W)
        # unless one of the channel dims is 1.
        # TODO(synk): dim == 1 broadcast edge case (conv output broadcast over x).
        raise ValueError(
            "ResidualBlock with in_dim != dim is only well-formed (in PyTorch "
            "too) when the residual add broadcasts; this implementation "
            "handles in_dim == 1."
        )

    return _conv1x1_path(x_nchw, params["weight"], params["bias"], dim)


if __name__ == "__main__":
    key = jax.random.PRNGKey(0)
    k1, k2, k3, k4 = jax.random.split(key, 4)

    # ---- Case 1: in_dim == dim == 4 -> res_branch is Identity, out = relu(2x)
    x = jax.random.normal(k1, (2, 4, 16, 16), dtype=jnp.float32)
    out1 = jax.block_until_ready(residual_block_forward(x, {}, in_dim=4, dim=4))
    ref1 = jnp.maximum(x + x, 0.0)
    assert out1.shape == ref1.shape and out1.dtype == ref1.dtype
    assert jnp.allclose(out1, ref1, atol=1e-6), "identity-path mismatch"

    # ---- Case 2: in_dim = 1 != dim = 8 -> res_branch is Conv2d(1, 8, kernel_size=1)
    in_dim, dim = 1, 8
    x_conv = jax.random.normal(k2, (2, in_dim, 16, 16), dtype=jnp.float32)
    # Deterministic init mimicking PyTorch Conv2d default (uniform in +-1/sqrt(fan_in)).
    bound = 1.0 / (in_dim * 1 * 1) ** 0.5
    weight = jax.random.uniform(k3, (dim, in_dim, 1, 1), jnp.float32, -bound, bound)
    bias = jax.random.uniform(k4, (dim,), jnp.float32, -bound, bound)
    params = {"weight": weight, "bias": bias}

    out2 = jax.block_until_ready(
        residual_block_forward(x_conv, params, in_dim=in_dim, dim=dim)
    )
    conv_ref = (
        jnp.einsum("nihw,oi->nohw", x_conv, weight[:, :, 0, 0])
        + bias[None, :, None, None]
    )
    ref2 = jnp.maximum(conv_ref + x_conv, 0.0)  # residual add broadcasts over channels
    assert out2.shape == ref2.shape and out2.dtype == ref2.dtype
    assert jnp.allclose(out2, ref2, atol=1e-5), "conv-path mismatch"

    print("KERNEL_OK")
</pallas_src>

<mosaic_0001>
module attributes {stable_mosaic.version = 11 : i64} {
  func.func @_relu_double_kernel(%arg0: i32, %arg1: memref<8x512xf32, #tpu.memory_space<vmem>>, %arg2: memref<8x512xf32, #tpu.memory_space<vmem>>) attributes {dimension_semantics = [#tpu.dimension_semantics<parallel>], iteration_bounds = array<i64: 1>, scalar_prefetch = 0 : i64, scratch_operands = 0 : i64, tpu.core_type = #tpu.core_type<tc>, window_params = [{transform_indices = @transform_0, window_bounds = array<i64: 8, 512>}, {transform_indices = @transform_1, window_bounds = array<i64: 8, 512>}]} {
    %c0 = arith.constant 0 : index
    %c0_0 = arith.constant 0 : index
    %0 = vector.load %arg1[%c0, %c0_0] : memref<8x512xf32, #tpu.memory_space<vmem>>, vector<8x512xf32>
    %1 = arith.addf %0, %0 : vector<8x512xf32>
    %cst = arith.constant 0.000000e+00 : f32
    %2 = vector.broadcast %cst : f32 to vector<8x512xf32>
    %3 = arith.maximumf %1, %2 : vector<8x512xf32>
    %c0_1 = arith.constant 0 : index
    %c0_2 = arith.constant 0 : index
    %4 = vector.load %arg2[%c0_1, %c0_2] : memref<8x512xf32, #tpu.memory_space<vmem>>, vector<8x512xf32>
    tpu.vector_store %arg2[%c0_1, %c0_2], %3 {strides = array<i32>} : memref<8x512xf32, #tpu.memory_space<vmem>>, vector<8x512xf32>,
    return
  }
  func.func @transform_0(%arg0: i32) -> (i32, i32) {
    %c0_i32 = arith.constant 0 : i32
    %c0_i32_0 = arith.constant 0 : i32
    return %arg0, %c0_i32 : i32, i32
  }
  func.func @transform_1(%arg0: i32) -> (i32, i32) {
    %c0_i32 = arith.constant 0 : i32
    %c0_i32_0 = arith.constant 0 : i32
    return %arg0, %c0_i32 : i32, i32
  }
}

</mosaic_0001>

<llo_original>
// kernel: tpu_custom_call.1
$region0: #{tpu_custom_call.1}
  #allocation0 [shape = 'u32[]', space=smem, size = 0x4, offset = 0x4, fixed_abs, tag = 'smem constant byte address 0x4 - core index']
  #allocation1 [shape = 'u32[72,128]{1,0:T(1,128)}', space=vmem, size = 0x9000, scoped, tag = 'internal scratch']
  %s0 = inlined_call_operand.hbm [shape: f32[8,512], index: 0, kind: input, shape index: {}]
  %s1 = inlined_call_operand.hbm [shape: f32[8,512], index: 1, kind: output, shape index: {}]
  %s2 = sld [smem:[#allocation0]]
  $region18: #{tpu_custom_call.1} parent=0
    _
  %s4 = ssub.s32 1, %s2
  %s5 = scalar_select 0, %s4, %s2
  $region1: #{tpu_custom_call.1} parent=0
    #allocation2 [shape = 'u8[16384]{0}', space=vmem, size = 0x4000, scoped, tag = 'input window, operand 0, single buffered']
    #allocation3 [shape = 's32[1]{0}', space=sflag, size = 0x4, scoped, tag = 'scoped memory for tpu_custom_call.1']
    #allocation4 [shape = 's32[1]{0}', space=sflag, size = 0x4, scoped, tag = 'scoped memory for tpu_custom_call.1']
    #allocation5 [shape = 'u8[16384]{0}', space=vmem, size = 0x4000, scoped, tag = 'output window, operand 0, single buffered']
    %6 = vsyncpa [#allocation3], 0
    %7 = vsyncpa [#allocation4], 0
    // Predicated region
    $region2: #{tpu_custom_call.1} parent=1 // pred_check
      _
    $region3: #{tpu_custom_call.1} parent=1 // pred_check_branch
      %9 = sbr.rel (0) target = $region5
    $region4: #{tpu_custom_call.1} parent=1 // pred_region
      %11 = vsyncadd [#allocation3], 0
      %s13 = sshll.u32 %s0, 4
      %s14 = int_to_ptr.hbm [resolvable:$true] %s13
      %s15 = sshll.u32 [#allocation2], 4
      %s16 = int_to_ptr.vmem [resolvable:$true] %s15
      %18 = dma.hbm_to_vmem [thread:$0]  %s14, 512, %s16, [#allocation3]
    $region5: #{tpu_custom_call.1} parent=1 // pred_fallthru
      _
    // Predicated region
    $region6: #{tpu_custom_call.1} parent=1 // pred_check
      _
    $region7: #{tpu_custom_call.1} parent=1 // pred_check_branch
      %20 = sbr.rel (0) target = $region9
    $region8: #{tpu_custom_call.1} parent=1 // pred_region
      %22 = dma.done [#allocation3], 512
    $region9: #{tpu_custom_call.1} parent=1 // pred_fallthru
      _
    %v23 = vld [vmem:[#allocation2] sm:$0xff]
    %v24 = vld [vmem:[#allocation2 + $0x8] sm:$0xff]
    %v25 = vld [vmem:[#allocation2 + $0x10] sm:$0xff]
    %v26 = vld [vmem:[#allocation2 + $0x18] sm:$0xff]
    %v27 = vadd.f32 %v23, %v23
    %v28 = vadd.f32 %v24, %v24
    %v29 = vadd.f32 %v25, %v25
    %v30 = vadd.f32 %v26, %v26
    %v31 = vmax.f32 %v27, 0.0
    %v32 = vmax.f32 %v28, 0.0
    %v33 = vmax.f32 %v29, 0.0
    %v34 = vmax.f32 %v30, 0.0
    %35 = vst [vmem:[#allocation5] sm:$0xff] %v31
    %36 = vst [vmem:[#allocation5 + $0x8] sm:$0xff] %v32
    %37 = vst [vmem:[#allocation5 + $0x10] sm:$0xff] %v33
    %38 = vst [vmem:[#allocation5 + $0x18] sm:$0xff] %v34
    // Predicated region
    $region10: #{tpu_custom_call.1} parent=1 // pred_check
      _
    $region11: #{tpu_custom_call.1} parent=1 // pred_check_branch
      %40 = sbr.rel (0) target = $region13
    $region12: #{tpu_custom_call.1} parent=1 // pred_region
      %42 = vsyncadd [#allocation4], 0
      %s44 = sshll.u32 [#allocation5], 4
      %s45 = int_to_ptr.vmem [resolvable:$true] %s44
      %s46 = sshll.u32 %s1, 4
      %s47 = int_to_ptr.hbm [resolvable:$true] %s46
      %49 = dma.vmem_to_hbm [thread:$0]  %s45, 512, %s47, [#allocation4]
    $region13: #{tpu_custom_call.1} parent=1 // pred_fallthru
      _
    // Predicated region
    $region14: #{tpu_custom_call.1} parent=1 // pred_check
      _
    $region15: #{tpu_custom_call.1} parent=1 // pred_check_branch
      %51 = sbr.rel (0) target = $region17
    $region16: #{tpu_custom_call.1} parent=1 // pred_region
      %53 = dma.done [#allocation4], 512
    $region17: #{tpu_custom_call.1} parent=1 // pred_fallthru
      _
    %54 = vsyncpa [#allocation3], 1
    %55 = vsyncpa [#allocation4], 1

</llo_original>
